<compile_context>
chip_gen: v5e
topology: v5e:2x2
jax: 0.10.0
libtpu: 0.0.40
codegen_flags: <defaults>
</compile_context>

<pallas_src>
import functools

import jax
import jax.numpy as jnp
from jax.experimental import pallas as pl
from jax.experimental.pallas import tpu as pltpu

_LANES = 128


def _tpu_config():
    """Return (row_tile_cap, tensorcores_per_device, prefer_core_parallel)."""
    try:
        kind = jax.devices()[0].device_kind.lower()
    except Exception:
        return 4096, 1, False
    if "v7" in kind:
        # 2 TC/chip; 8192-row f32 tiles -> 16 MiB double-buffered < 32 MiB scoped.
        return 8192, 2, True
    if "v6" in kind:
        return 8192, 1, False
    if "v5e" in kind or "lite" in kind:
        # Stay inside v5e's 16 MiB default scoped VMEM (8 MiB double-buffered).
        return 4096, 1, False
    if "v5" in kind or "v4" in kind:
        # v4 / v5p megacore: 2 TensorCores, classic "parallel" sharding.
        return 4096, 2, False
    return 4096, 1, False


def _loss_tile(l_ref, t_ref, alpha, gamma):
    """Per-element focal loss for the current tile, computed in f32."""
    l = l_ref[...].astype(jnp.float32)
    t = t_ref[...]
    # Build the positive-class mask in the target's native dtype (no f32 cast).
    if t.dtype == jnp.bool_:
        pos = t
    elif jnp.issubdtype(t.dtype, jnp.floating):
        pos = t >= jnp.asarray(0.5, t.dtype)
    else:                                   # integer targets: t >= 0.5  <=>  t > 0
        pos = t > jnp.asarray(0, t.dtype)

    # where(t>=0.5, sigmoid(l), 1 - sigmoid(l)) == sigmoid(where(t>=0.5, l, -l))
    p = jax.nn.sigmoid(jnp.where(pos, l, -l))
    omp = 1.0 - p
    logp = -jnp.log(jnp.clip(p, 0.0001, 1.0 - 0.0001))

    if gamma == int(gamma) and 0.0 <= gamma <= 4.0:
        g = int(gamma)
        if g == 0:
            focal = jnp.ones_like(omp)
        elif g == 1:
            focal = omp
        elif g == 2:
            focal = omp * omp
        elif g == 3:
            focal = omp * omp * omp
        else:  # g == 4
            sq = omp * omp
            focal = sq * sq
    else:
        focal = omp ** gamma
    return alpha * focal * logp


def _focal_sum_kernel(l_ref, t_ref, out_ref, acc_ref, *,
                      alpha: float, gamma: float,
                      tiles_per_core: int, nb_full: int, boundary_rem: int):
    c = pl.program_id(0)   # core split (CORE_PARALLEL / parallel on multi-TC chips)
    j = pl.program_id(1)   # row-tile reduction axis
    logical_block = c * tiles_per_core + j

    @pl.when(j == 0)
    def _():
        acc_ref[...] = jnp.zeros_like(acc_ref)

    def _accumulate(loss):
        # Per-lane accumulation across grid steps; full cross-lane reduce deferred.
        acc_ref[...] += jnp.sum(loss, axis=0, keepdims=True)

    if nb_full > 0:
        @pl.when(logical_block < nb_full)          # full tiles: no masking at all
        def _():
            _accumulate(_loss_tile(l_ref, t_ref, alpha, gamma))

    if boundary_rem > 0:
        @pl.when(logical_block == nb_full)         # the single partial boundary tile
        def _():
            loss = _loss_tile(l_ref, t_ref, alpha, gamma)
            rid = jax.lax.broadcasted_iota(jnp.int32, loss.shape, 0)
            lid = jax.lax.broadcasted_iota(jnp.int32, loss.shape, 1)
            loss = jnp.where(rid * _LANES + lid < boundary_rem, loss, 0.0)
            _accumulate(loss)

    # Over-read tiles of the core split (logical_block >= number of real tiles)
    # fall through here with no accumulation at all.

    @pl.when(j == pl.num_programs(1) - 1)
    def _():
        out_ref[0, 0] = jnp.sum(acc_ref[...])


def focal_loss_multilabel(logits, targets, num_labels: int,
                          alpha: float = 0.25, gamma: float = 2.0,
                          block_rows_cap: int | None = None):
    assert logits.shape == targets.shape
    n = logits.size

    cap, num_cores, prefer_core_parallel = _tpu_config()
    if block_rows_cap is not None:
        cap = block_rows_cap

    # Flatten in original dtype; minimal lane padding (pad values are masked out).
    l = logits.reshape(-1)
    t = targets.reshape(-1)
    pad = (-n) % _LANES
    if pad:
        l = jnp.pad(l, (0, pad))
        t = jnp.pad(t, (0, pad))
    rows = (n + pad) // _LANES
    l2 = l.reshape(rows, _LANES)
    t2 = t.reshape(rows, _LANES)

    # Either a multiple of 8 (the cap) or the full row extent -> legal block shape.
    block_rows = rows if rows <= cap else cap
    nb = -(-rows // block_rows)                        # number of real row tiles
    num_splits = num_cores if (num_cores > 1 and nb >= 2) else 1
    tiles_per_core = -(-nb // num_splits)

    tile_elems = block_rows * _LANES
    boundary_rem = n - (nb - 1) * tile_elems           # valid elements in last tile
    if boundary_rem == tile_elems:                     # last tile is full: no mask
        boundary_rem = 0
        nb_full = nb
    else:
        nb_full = nb - 1

    kernel = functools.partial(
        _focal_sum_kernel, alpha=float(alpha), gamma=float(gamma),
        tiles_per_core=tiles_per_core, nb_full=nb_full,
        boundary_rem=boundary_rem)

    def in_index_map(c, j):
        # Clamp so the auto-DMA of over-read tiles never reads out of bounds;
        # those tiles contribute nothing (no accumulate branch fires).
        return (jnp.minimum(c * tiles_per_core + j, nb - 1), 0)

    def run(dim_semantics):
        return pl.pallas_call(
            kernel,
            out_shape=jax.ShapeDtypeStruct((num_splits, 1), jnp.float32),
            grid=(num_splits, tiles_per_core),
            in_specs=[
                pl.BlockSpec((block_rows, _LANES), in_index_map),
                pl.BlockSpec((block_rows, _LANES), in_index_map),
            ],
            out_specs=pl.BlockSpec((1, 1), lambda c, j: (c, 0),
                                   memory_space=pltpu.SMEM),
            scratch_shapes=[pltpu.VMEM((1, _LANES), jnp.float32)],
            compiler_params=pltpu.CompilerParams(
                dimension_semantics=dim_semantics),
        )(l2, t2)

    if num_splits > 1:
        candidates = []
        core_par = getattr(pltpu, "CORE_PARALLEL", None)
        arb = getattr(pltpu, "ARBITRARY", "arbitrary")
        if prefer_core_parallel and core_par is not None:
            candidates.append((core_par, arb))         # real 2-TC sharding on v7x
        candidates.append(("parallel", "arbitrary"))   # megacore / fallback
    else:
        candidates = [("arbitrary", "arbitrary")]

    partials, last_err = None, None
    for sems in candidates:
        try:
            partials = run(sems)
            if len(candidates) > 1:
                # Force compilation/execution so a rejected CORE_PARALLEL falls back.
                partials = jax.block_until_ready(partials)
            break
        except Exception as err:                       # pragma: no cover
            partials, last_err = None, err
    if partials is None:
        raise last_err

    total = jnp.sum(partials)
    return (num_labels * total / n).astype(jnp.float32)


def _reference(logits, targets, num_labels, alpha=0.25, gamma=2.0):
    l = logits.reshape(-1).astype(jnp.float32)
    t = targets.reshape(-1).astype(jnp.float32)
    p = jax.nn.sigmoid(l)
    p = jnp.where(t >= 0.5, p, 1.0 - p)
    logp = -jnp.log(jnp.clip(p, 0.0001, 1.0 - 0.0001))
    loss = alpha * (1.0 - p) ** gamma * logp
    return num_labels * jnp.mean(loss)


if __name__ == "__main__":
    key = jax.random.PRNGKey(0)
    k_logits, k_targets = jax.random.split(key)

    # 1) Small multi-label setup, f32, N divisible by 128 (no mask path).
    batch, num_labels = 8, 16
    logits = jax.random.normal(k_logits, (batch, num_labels), jnp.float32) * 2.0
    targets = jax.random.bernoulli(k_targets, p=0.3,
                                   shape=(batch, num_labels)).astype(jnp.float32)
    out = jax.block_until_ready(
        focal_loss_multilabel(logits, targets, num_labels, 0.25, 2.0))
    ref = _reference(logits, targets, num_labels, 0.25, 2.0)
    assert jnp.allclose(out, ref, rtol=1e-5, atol=1e-6), (out, ref)

    # 2) Ragged N (7*13 = 91 -> padded to 128): boundary-mask-only path.
    b2, nl2 = 7, 13
    l2 = jax.random.normal(k_logits, (b2, nl2), jnp.float32) * 3.0
    t2 = jax.random.bernoulli(k_targets, p=0.5,
                              shape=(b2, nl2)).astype(jnp.float32)
    out2 = jax.block_until_ready(focal_loss_multilabel(l2, t2, nl2))
    ref2 = _reference(l2, t2, nl2)
    assert jnp.allclose(out2, ref2, rtol=1e-5, atol=1e-6), (out2, ref2)

    # 3) bf16 logits + int32 targets (in-kernel cast, native-dtype target compare).
    b3, nl3 = 33, 77
    l3 = (jax.random.normal(k_logits, (b3, nl3), jnp.float32) * 2.0
          ).astype(jnp.bfloat16)
    t3 = jax.random.bernoulli(k_targets, p=0.4,
                              shape=(b3, nl3)).astype(jnp.int32)
    out3 = jax.block_until_ready(focal_loss_multilabel(l3, t3, nl3))
    ref3 = _reference(l3.astype(jnp.float32), t3.astype(jnp.float32), nl3)
    assert jnp.allclose(out3, ref3, rtol=1e-4, atol=1e-6), (out3, ref3)

    # 4) Force a tiny row-tile cap to exercise the multi-tile grid: full tiles
    #    (unmasked branch), the partial boundary tile, and - on multi-TC chips -
    #    the core split with a skipped over-read tile.
    b4, nl4 = 25, 130
    l4 = jax.random.normal(k_logits, (b4, nl4), jnp.float32) * 2.0
    t4 = jax.random.bernoulli(k_targets, p=0.35,
                              shape=(b4, nl4)).astype(jnp.float32)
    out4 = jax.block_until_ready(
        focal_loss_multilabel(l4, t4, nl4, block_rows_cap=8))
    ref4 = _reference(l4, t4, nl4)
    assert jnp.allclose(out4, ref4, rtol=1e-5, atol=1e-6), (out4, ref4)

    print("KERNEL_OK")
</pallas_src>

<mosaic_0001>
module attributes {stable_mosaic.version = 11 : i64} {
  func.func @_focal_sum_kernel(%arg0: i32, %arg1: i32, %arg2: memref<1x128xf32, #tpu.memory_space<vmem>>, %arg3: memref<1x128xf32, #tpu.memory_space<vmem>>, %arg4: memref<1x1xf32, #tpu.memory_space<smem>>, %arg5: memref<1x128xf32, #tpu.memory_space<vmem>>) attributes {dimension_semantics = [#tpu.dimension_semantics<arbitrary>, #tpu.dimension_semantics<arbitrary>], iteration_bounds = array<i64: 1, 1>, scalar_prefetch = 0 : i64, scratch_operands = 1 : i64, tpu.core_type = #tpu.core_type<tc>, window_params = [{transform_indices = @transform_0, window_bounds = array<i64: 1, 128>}, {transform_indices = @transform_1, window_bounds = array<i64: 1, 128>}, {transform_indices = @transform_2, window_bounds = array<i64: 1, 1>}]} {
    %c1_i32 = arith.constant 1 : i32
    %0 = arith.muli %arg0, %c1_i32 : i32
    %1 = arith.addi %0, %arg1 : i32
    %c0_i32 = arith.constant 0 : i32
    %2 = arith.cmpi eq, %arg1, %c0_i32 : i32
    %3 = arith.extui %2 : i1 to i32
    %c0_i32_0 = arith.constant 0 : i32
    %4 = arith.cmpi ne, %3, %c0_i32_0 : i32
    scf.if %4 {
      %cst = arith.constant 0.000000e+00 : f32
      %11 = vector.broadcast %cst : f32 to vector<1x128xf32>
      %c0 = arith.constant 0 : index
      %c0_5 = arith.constant 0 : index
      %12 = vector.load %arg5[%c0, %c0_5] : memref<1x128xf32, #tpu.memory_space<vmem>>, vector<1x128xf32>
      tpu.vector_store %arg5[%c0, %c0_5], %11 {strides = array<i32>} : memref<1x128xf32, #tpu.memory_space<vmem>>, vector<1x128xf32>,
    } else {
    }
    %c1_i32_1 = arith.constant 1 : i32
    %5 = arith.cmpi slt, %1, %c1_i32_1 : i32
    %6 = arith.extui %5 : i1 to i32
    %c0_i32_2 = arith.constant 0 : i32
    %7 = arith.cmpi ne, %6, %c0_i32_2 : i32
    scf.if %7 {
      %c0 = arith.constant 0 : index
      %c0_5 = arith.constant 0 : index
      %11 = vector.load %arg2[%c0, %c0_5] : memref<1x128xf32, #tpu.memory_space<vmem>>, vector<1x128xf32>
      %c0_6 = arith.constant 0 : index
      %c0_7 = arith.constant 0 : index
      %12 = vector.load %arg3[%c0_6, %c0_7] : memref<1x128xf32, #tpu.memory_space<vmem>>, vector<1x128xf32>
      %cst = arith.constant 5.000000e-01 : f32
      %13 = vector.broadcast %cst : f32 to vector<1x128xf32>
      %14 = arith.cmpf oge, %12, %13 : vector<1x128xf32>
      %cst_8 = arith.constant 0.000000e+00 : f32
      %15 = vector.broadcast %cst_8 : f32 to vector<1x128xf32>
      %16 = arith.subf %15, %11 : vector<1x128xf32>
      %17 = arith.select %14, %11, %16 : vector<1x128xi1>, vector<1x128xf32>
      %18 = arith.negf %17 : vector<1x128xf32>
      %19 = math.exp %18 : vector<1x128xf32>
      %cst_9 = arith.constant 1.000000e+00 : f32
      %20 = vector.broadcast %cst_9 : f32 to vector<1x128xf32>
      %21 = arith.addf %20, %19 : vector<1x128xf32>
      %22 = arith.divf %20, %21 : vector<1x128xf32>
      %cst_10 = arith.constant 1.000000e+00 : f32
      %23 = vector.broadcast %cst_10 : f32 to vector<1x128xf32>
      %24 = arith.subf %23, %22 : vector<1x128xf32>
      %cst_11 = arith.constant 9.99999974E-5 : f32
      %cst_12 = arith.constant 0.999899983 : f32
      %25 = vector.broadcast %cst_11 : f32 to vector<1x128xf32>
      %26 = arith.maximumf %25, %22 : vector<1x128xf32>
      %27 = vector.broadcast %cst_12 : f32 to vector<1x128xf32>
      %28 = arith.minimumf %27, %26 : vector<1x128xf32>
      %29 = math.log %28 : vector<1x128xf32>
      %cst_13 = arith.constant 0.000000e+00 : f32
      %30 = vector.broadcast %cst_13 : f32 to vector<1x128xf32>
      %31 = arith.subf %30, %29 : vector<1x128xf32>
      %32 = arith.mulf %24, %24 : vector<1x128xf32>
      %cst_14 = arith.constant 2.500000e-01 : f32
      %33 = vector.broadcast %cst_14 : f32 to vector<1x128xf32>
      %34 = arith.mulf %33, %32 : vector<1x128xf32>
      %35 = arith.mulf %34, %31 : vector<1x128xf32>
      %c0_15 = arith.constant 0 : index
      %c0_16 = arith.constant 0 : index
      %36 = vector.load %arg5[%c0_15, %c0_16] : memref<1x128xf32, #tpu.memory_space<vmem>>, vector<1x128xf32>
      %cst_17 = arith.constant dense<0.000000e+00> : vector<128xf32>
      %37 = vector.multi_reduction <add>, %35, %cst_17 [0] : vector<1x128xf32> to vector<128xf32>
      %38 = vector.shape_cast %37 : vector<128xf32> to vector<1x128xf32>
      %39 = arith.addf %36, %38 : vector<1x128xf32>
      %c0_18 = arith.constant 0 : index
      %c0_19 = arith.constant 0 : index
      %40 = vector.load %arg5[%c0_18, %c0_19] : memref<1x128xf32, #tpu.memory_space<vmem>>, vector<1x128xf32>
      tpu.vector_store %arg5[%c0_18, %c0_19], %39 {strides = array<i32>} : memref<1x128xf32, #tpu.memory_space<vmem>>, vector<1x128xf32>,
    } else {
    }
    %c0_i32_3 = arith.constant 0 : i32
    %8 = arith.cmpi eq, %arg1, %c0_i32_3 : i32
    %9 = arith.extui %8 : i1 to i32
    %c0_i32_4 = arith.constant 0 : i32
    %10 = arith.cmpi ne, %9, %c0_i32_4 : i32
    scf.if %10 {
      %c0 = arith.constant 0 : index
      %c0_5 = arith.constant 0 : index
      %11 = vector.load %arg5[%c0, %c0_5] : memref<1x128xf32, #tpu.memory_space<vmem>>, vector<1x128xf32>
      %12 = vector.shape_cast %11 : vector<1x128xf32> to vector<1x1x128xf32>
      %cst = arith.constant dense<0.000000e+00> : vector<1xf32>
      %13 = vector.multi_reduction <add>, %12, %cst [1, 2] : vector<1x1x128xf32> to vector<1xf32>
      %14 = vector.shape_cast %13 : vector<1xf32> to vector<1x1x1xf32>
      %15 = vector.extract %14[0, 0, 0] : f32 from vector<1x1x1xf32>
      %c0_6 = arith.constant 0 : index
      %c0_7 = arith.constant 0 : index
      %16 = memref.load %arg4[%c0_6, %c0_7] : memref<1x1xf32, #tpu.memory_space<smem>>
      memref.store %15, %arg4[%c0_6, %c0_7] : memref<1x1xf32, #tpu.memory_space<smem>>
    } else {
    }
    return
  }
  func.func @transform_0(%arg0: i32, %arg1: i32) -> (i32, i32) {
    %c1_i32 = arith.constant 1 : i32
    %0 = arith.muli %arg0, %c1_i32 : i32
    %1 = arith.addi %0, %arg1 : i32
    %c0_i32 = arith.constant 0 : i32
    %2 = arith.minsi %1, %c0_i32 : i32
    %c0_i32_0 = arith.constant 0 : i32
    %c0_i32_1 = arith.constant 0 : i32
    return %2, %c0_i32_0 : i32, i32
  }
  func.func @transform_1(%arg0: i32, %arg1: i32) -> (i32, i32) {
    %c1_i32 = arith.constant 1 : i32
    %0 = arith.muli %arg0, %c1_i32 : i32
    %1 = arith.addi %0, %arg1 : i32
    %c0_i32 = arith.constant 0 : i32
    %2 = arith.minsi %1, %c0_i32 : i32
    %c0_i32_0 = arith.constant 0 : i32
    %c0_i32_1 = arith.constant 0 : i32
    return %2, %c0_i32_0 : i32, i32
  }
  func.func @transform_2(%arg0: i32, %arg1: i32) -> (i32, i32) {
    %c0_i32 = arith.constant 0 : i32
    %c0_i32_0 = arith.constant 0 : i32
    return %arg0, %c0_i32 : i32, i32
  }
}

</mosaic_0001>

<llo_original>
// kernel: tpu_custom_call.1
$region0: #{tpu_custom_call.1}
  #allocation0 [shape = 'u32[]', space=smem, size = 0x4, offset = 0x4, fixed_abs, tag = 'smem constant byte address 0x4 - core index']
  #allocation1 [shape = 'u32[72,128]{1,0:T(1,128)}', space=vmem, size = 0x9000, scoped, tag = 'internal scratch']
  #allocation2 [shape = 'f32[1,128]{1,0:T(1,128)}', space=vmem, size = 0x200, scoped, tag = 'scratch operand']
  %s0 = inlined_call_operand.hbm [shape: f32[1,128], index: 0, kind: input, shape index: {}]
  %s1 = inlined_call_operand.hbm [shape: f32[1,128], index: 1, kind: input, shape index: {}]
  %s2 = inlined_call_operand.hbm [shape: f32[1,1], index: 2, kind: output, shape index: {}]
  %s3 = sld [smem:[#allocation0]]
  $region38: #{tpu_custom_call.1} parent=0
    _
  %s5 = ssub.s32 1, %s3
  %s6 = scalar_select 0, %s5, %s3
  $region1: #{tpu_custom_call.1} parent=0
    #allocation3 [shape = 'u8[512]{0}', space=vmem, size = 0x400, scoped, tag = 'input window, operand 0, single buffered']
    #allocation4 [shape = 's32[1]{0}', space=sflag, size = 0x4, scoped, tag = 'scoped memory for tpu_custom_call.1']
    #allocation5 [shape = 's32[1]{0}', space=sflag, size = 0x4, scoped, tag = 'scoped memory for tpu_custom_call.1']
    #allocation6 [shape = 'u8[512]{0}', space=vmem, size = 0x400, scoped, tag = 'input window, operand 1, single buffered']
    #allocation7 [shape = 's32[1]{0}', space=sflag, size = 0x4, scoped, tag = 'scoped memory for tpu_custom_call.1']
    #allocation8 [shape = 'u8[512]{0}', space=smem, size = 0x200, scoped, tag = 'output window, operand 0, single buffered']
    %7 = vsyncpa [#allocation4], 0
    %8 = vsyncpa [#allocation7], 0
    %9 = vsyncpa [#allocation5], 0
    // Predicated region
    $region2: #{tpu_custom_call.1} parent=1 // pred_check
      _
    $region3: #{tpu_custom_call.1} parent=1 // pred_check_branch
      %11 = sbr.rel (0) target = $region5
    $region4: #{tpu_custom_call.1} parent=1 // pred_region
      %s12 = sadd.s32 0, 0
      %p13 = scmp.lt.s32.totalorder %s12, 0
      %s14 = scalar_select %p13, %s12, 0
      %16 = vsyncadd [#allocation4], 0
      %s17 = scalar_lea.hbm %s0, %s14
      %s19 = sshll.u32 %s17, 4
      %s20 = int_to_ptr.hbm [resolvable:$true] %s19
      %s21 = sshll.u32 [#allocation3], 4
      %s22 = int_to_ptr.vmem [resolvable:$true] %s21
      %24 = dma.hbm_to_vmem [thread:$0]  %s20, 16, %s22, [#allocation4]
    $region5: #{tpu_custom_call.1} parent=1 // pred_fallthru
      _
    // Predicated region
    $region6: #{tpu_custom_call.1} parent=1 // pred_check
      _
    $region7: #{tpu_custom_call.1} parent=1 // pred_check_branch
      %26 = sbr.rel (0) target = $region9
    $region8: #{tpu_custom_call.1} parent=1 // pred_region
      %s27 = sadd.s32 0, 0
      %p28 = scmp.lt.s32.totalorder %s27, 0
      %s29 = scalar_select %p28, %s27, 0
      %31 = vsyncadd [#allocation7], 0
      %s32 = scalar_lea.hbm %s1, %s29
      %s34 = sshll.u32 %s32, 4
      %s35 = int_to_ptr.hbm [resolvable:$true] %s34
      %s36 = sshll.u32 [#allocation6], 4
      %s37 = int_to_ptr.vmem [resolvable:$true] %s36
      %39 = dma.hbm_to_vmem [thread:$0]  %s35, 16, %s37, [#allocation7]
    $region9: #{tpu_custom_call.1} parent=1 // pred_fallthru
      _
    // Predicated region
    $region10: #{tpu_custom_call.1} parent=1 // pred_check
      _
    $region11: #{tpu_custom_call.1} parent=1 // pred_check_branch
      %41 = sbr.rel (0) target = $region13
    $region12: #{tpu_custom_call.1} parent=1 // pred_region
      %43 = dma.done [#allocation4], 16
    $region13: #{tpu_custom_call.1} parent=1 // pred_fallthru
      _
    // Predicated region
    $region14: #{tpu_custom_call.1} parent=1 // pred_check
      _
    $region15: #{tpu_custom_call.1} parent=1 // pred_check_branch
      %45 = sbr.rel (0) target = $region17
    $region16: #{tpu_custom_call.1} parent=1 // pred_region
      %47 = dma.done [#allocation7], 16
    $region17: #{tpu_custom_call.1} parent=1 // pred_fallthru
      _
    %s48 = sadd.s32 0, 0
    %p49 = scmp.lt.s32.totalorder %s48, 0
    %s50 = scalar_select %p49, %s48, 0
    %s51 = sadd.s32 0, 0
    %p52 = scmp.lt.s32.totalorder %s51, 0
    %s53 = scalar_select %p52, %s51, 0
    %s54 = sadd.s32 0, 0
    %p55 = scmp.eq.s32.totalorder 0, 0
    // Predicated region
    $region18: #{tpu_custom_call.1} parent=1 // pred_check
      %p56 = pneg %p55
    $region19: #{tpu_custom_call.1} parent=1 // pred_check_branch
      %58 = sbr.rel (%p56) target = $region21
    $region20: #{tpu_custom_call.1} parent=1 // pred_region
      %59 = vst [vmem:[#allocation2] sm:$0x1] 0.0
    $region21: #{tpu_custom_call.1} parent=1 // pred_fallthru
      _
    %p60 = scmp.lt.s32.totalorder %s54, 1
    // Predicated region
    $region22: #{tpu_custom_call.1} parent=1 // pred_check
      %p61 = pneg %p60
    $region23: #{tpu_custom_call.1} parent=1 // pred_check_branch
      %63 = sbr.rel (%p61) target = $region25
    $region24: #{tpu_custom_call.1} parent=1 // pred_region
      %v64 = vld [vmem:[#allocation3] sm:$0x1]
      %v65 = vld [vmem:[#allocation6] sm:$0x1]
      %vm66 = vcmp.ge.f32.partialorder %v65, 0.5
      %v67 = vsub.f32 0.0, %v64
      %v68 = vsel %vm66, %v64, %v67
      %v69 = vxor.u32 %v68, 2147483648
      %v70 = vmul.f32 %v69, 1.442695
      %v71 = vpow.pop %v70
      %v72 = vadd.f32 %v71, 1.0
      %v73 = vrcp.pop %v72
      %v74 = vmul.f32 %v72, %v73
      %v75 = vsub.f32 1.0, %v74
      %v76 = vmul.f32 %v73, %v75
      %v77 = vadd.f32 %v73, %v76
      %vm78 = vweird.f32 %v72
      %vm79 = vweird.f32 %v73
      %vm80 = vmor %vm78, %vm79
      %v81 = vsel %vm80, %v73, %v77
      %v82 = vand.u32 2147483647, %v72
      %vm83 = vcmp.eq.f32.partialorder %v82, 8.507059e+37
      %v84 = vand.u32 %v72, 2147483648
      %v85 = vor.u32 1.1754944e-38, %v84
      %v86 = vsel %vm83, %v85, %v81
      %v87 = vmul.f32 1.0, %v86
      %v88 = vsub.f32 1.0, %v87
      %v89 = vmax.f32 %v87, 0.0001
      %v90 = vmin.f32 %v89, 0.9999
      %v91 = vlog2.pop %v90
      %v92 = vmul.f32 %v91, 0.6931472
      %v93 = vsub.f32 0.0, %v92
      %v94 = vmul.f32 %v88, %v88
      %v95 = vmul.f32 %v94, 0.25
      %v96 = vmul.f32 %v95, %v93
      %v97 = vld [vmem:[#allocation2] sm:$0x1]
      %v98 = vadd.f32 %v96, 0.0
      %v99 = vadd.f32 %v97, %v98
      %100 = vst [vmem:[#allocation2] sm:$0x1] %v99
    $region25: #{tpu_custom_call.1} parent=1 // pred_fallthru
      _
    // Predicated region
    $region26: #{tpu_custom_call.1} parent=1 // pred_check
      %p101 = pneg %p55
    $region27: #{tpu_custom_call.1} parent=1 // pred_check_branch
      %103 = sbr.rel (%p101) target = $region29
    $region28: #{tpu_custom_call.1} parent=1 // pred_region
      %v104 = vld [vmem:[#allocation2] sm:$0x1]
      %vm105 = vcmask 1040384
      %v106 = vsel %vm105, %v104, 0.0
      %107 = vadd.xlane.f32.xlu0 %v106
      %v108 = vpop.xlane.xlu0 %107
      %v109 = vrot.slane %v108, 4
      %v110 = vadd.f32 %v108, %v109
      %v111 = vrot.slane %v110, 2
      %v112 = vadd.f32 %v110, %v111
      %v113 = vrot.slane %v112, 1
      %v114 = vadd.f32 %v112, %v113
      %s115 = vtos %v114
      %s116 = scalar_lea.smem [#allocation8], 0
      %117 = sst [smem:[%s116]] %s115
    $region29: #{tpu_custom_call.1} parent=1 // pred_fallthru
      _
    // Predicated region
    $region30: #{tpu_custom_call.1} parent=1 // pred_check
      _
    $region31: #{tpu_custom_call.1} parent=1 // pred_check_branch
      %119 = sbr.rel (0) target = $region33
    $region32: #{tpu_custom_call.1} parent=1 // pred_region
      %121 = vsyncadd [#allocation5], 0
      %s123 = sshll.u32 %s2, 4
      %s124 = int_to_ptr.hbm [resolvable:$true] %s123
      %126 = dma.smem_to_hbm [#allocation8], 16, %s124, [#allocation5]
    $region33: #{tpu_custom_call.1} parent=1 // pred_fallthru
      _
    // Predicated region
    $region34: #{tpu_custom_call.1} parent=1 // pred_check
      _
    $region35: #{tpu_custom_call.1} parent=1 // pred_check_branch
      %128 = sbr.rel (0) target = $region37
    $region36: #{tpu_custom_call.1} parent=1 // pred_region
      %130 = dma.done [#allocation5], 16
    $region37: #{tpu_custom_call.1} parent=1 // pred_fallthru
      _
    %131 = sfence
    %132 = vsyncpa [#allocation4], 1
    %133 = vsyncpa [#allocation7], 1
    %134 = vsyncpa [#allocation5], 1

</llo_original>
